<compile_context>
chip_gen: v5e
topology: v5e:2x2
jax: 0.10.0
libtpu: 0.0.40
codegen_flags: <defaults>
</compile_context>

<pallas_src>
import jax
import jax.numpy as jnp
from jax.experimental import pallas as pl
from jax.experimental.pallas import tpu as pltpu

HIDDEN = 128
IN_FEATURES = 6
NUM_OUTPUTS = 2
OUT_PAD = 128          # lane-dense output width (sliced back to NUM_OUTPUTS)
MAX_TILE_B = 1024      # large row tiles amortize per-step overhead, fill MXU rows


def _round_up(n, m):
    return ((n + m - 1) // m) * m


def fnn_kernel(x_ref,
               w0_ref, b0_ref,
               w1_ref, b1_ref,
               w1a_ref, b1a_ref,
               w2_ref, b2_ref,
               out_ref):
    # x tile: (TILE_B, 6) f32 -> bf16 for the MXU.
    x = x_ref[...].astype(jnp.bfloat16)

    # Layer 0: (TILE_B, 6) @ (6, 128)   -- f32 accumulate, f32 bias/ReLU.
    h = jnp.dot(x, w0_ref[...], preferred_element_type=jnp.float32) + b0_ref[...]
    h = jnp.maximum(h, 0.0).astype(jnp.bfloat16)

    # Layer 1: (TILE_B, 128) @ (128, 128)
    h = jnp.dot(h, w1_ref[...], preferred_element_type=jnp.float32) + b1_ref[...]
    h = jnp.maximum(h, 0.0).astype(jnp.bfloat16)

    # Layer 1a: (TILE_B, 128) @ (128, 128)
    h = jnp.dot(h, w1a_ref[...], preferred_element_type=jnp.float32) + b1a_ref[...]
    h = jnp.maximum(h, 0.0).astype(jnp.bfloat16)

    # Layer 2 (no activation), padded to 128 output lanes for unmasked stores.
    y = jnp.dot(h, w2_ref[...], preferred_element_type=jnp.float32) + b2_ref[...]
    out_ref[...] = y.astype(out_ref.dtype)          # (TILE_B, 128), lane-dense


def init_params(key):
    """f32 params mimicking PyTorch nn.Linear defaults:
    U(-1/sqrt(fan_in), 1/sqrt(fan_in)) for weight and bias.
    Stored as (in, out) so the forward is x @ W + b."""
    dims = [("w0", "b0", IN_FEATURES, HIDDEN),
            ("w1", "b1", HIDDEN, HIDDEN),
            ("w1a", "b1a", HIDDEN, HIDDEN),
            ("w2", "b2", HIDDEN, NUM_OUTPUTS)]
    params = {}
    for wname, bname, fan_in, fan_out in dims:
        key, kw, kb = jax.random.split(key, 3)
        bound = 1.0 / jnp.sqrt(jnp.float32(fan_in))
        params[wname] = jax.random.uniform(
            kw, (fan_in, fan_out), jnp.float32, minval=-bound, maxval=bound)
        params[bname] = jax.random.uniform(
            kb, (1, fan_out), jnp.float32, minval=-bound, maxval=bound)
    return params


def prepare_kernel_params(params):
    """One-time host-side prep: bf16 weights for the MXU, f32 biases,
    fc2 weight/bias zero-padded from 2 -> 128 output columns (lane-dense out)."""
    kp = {
        "w0": params["w0"].astype(jnp.bfloat16),
        "b0": params["b0"].astype(jnp.float32),
        "w1": params["w1"].astype(jnp.bfloat16),
        "b1": params["b1"].astype(jnp.float32),
        "w1a": params["w1a"].astype(jnp.bfloat16),
        "b1a": params["b1a"].astype(jnp.float32),
    }
    w2 = jnp.zeros((HIDDEN, OUT_PAD), jnp.bfloat16)
    w2 = w2.at[:, :NUM_OUTPUTS].set(params["w2"].astype(jnp.bfloat16))
    b2 = jnp.zeros((1, OUT_PAD), jnp.float32)
    b2 = b2.at[:, :NUM_OUTPUTS].set(params["b2"].astype(jnp.float32))
    kp["w2"] = w2
    kp["b2"] = b2
    return kp


def fnn_forward(x, kparams, tile_b=None):
    """x: (B, ...) with 6 total features per row. Returns (B, 2) f32."""
    B = x.shape[0]
    x = x.reshape(B, -1).astype(jnp.float32)        # matches torch reshape(B, -1)
    K = x.shape[1]
    assert K == IN_FEATURES, f"expected {IN_FEATURES} features, got {K}"

    if tile_b is None:
        tile_b = min(MAX_TILE_B, _round_up(B, 8))
    tile_b = _round_up(tile_b, 8)                   # sublane-aligned row tile
    b_pad = _round_up(B, tile_b)
    if b_pad != B:
        x = jnp.pad(x, ((0, b_pad - B), (0, 0)))

    grid = (pl.cdiv(b_pad, tile_b),)

    row_map = lambda i: (i, 0)                      # x / out: tiled over batch
    const_map = lambda i: (0, 0)                    # weights/biases: VMEM-resident

    in_specs = [
        pl.BlockSpec((tile_b, K), row_map),
        pl.BlockSpec((K, HIDDEN), const_map),
        pl.BlockSpec((1, HIDDEN), const_map),
        pl.BlockSpec((HIDDEN, HIDDEN), const_map),
        pl.BlockSpec((1, HIDDEN), const_map),
        pl.BlockSpec((HIDDEN, HIDDEN), const_map),
        pl.BlockSpec((1, HIDDEN), const_map),
        pl.BlockSpec((HIDDEN, OUT_PAD), const_map),
        pl.BlockSpec((1, OUT_PAD), const_map),
    ]
    out_spec = pl.BlockSpec((tile_b, OUT_PAD), row_map)

    y_padded = pl.pallas_call(
        fnn_kernel,
        out_shape=jax.ShapeDtypeStruct((b_pad, OUT_PAD), jnp.float32),
        grid=grid,
        in_specs=in_specs,
        out_specs=out_spec,
        compiler_params=pltpu.CompilerParams(
            dimension_semantics=("parallel",),      # megacore split on v7x
        ),
    )(x,
      kparams["w0"], kparams["b0"],
      kparams["w1"], kparams["b1"],
      kparams["w1a"], kparams["b1a"],
      kparams["w2"], kparams["b2"])

    # Slice padded batch rows and padded output lanes back to (B, 2).
    return y_padded[:B, :NUM_OUTPUTS]


def fnn_reference(x, params):
    """Pure-JAX f32 reference matching the PyTorch forward."""
    x = x.reshape(x.shape[0], -1).astype(jnp.float32)
    h = jnp.maximum(x @ params["w0"] + params["b0"], 0.0)
    h = jnp.maximum(h @ params["w1"] + params["b1"], 0.0)
    h = jnp.maximum(h @ params["w1a"] + params["b1a"], 0.0)
    return h @ params["w2"] + params["b2"]


if __name__ == "__main__":
    key = jax.random.PRNGKey(0)
    key, kx1, kx2 = jax.random.split(key, 3)

    params = init_params(key)
    kparams = prepare_kernel_params(params)

    # Small test 1: batch=8, single grid step.
    x1 = jax.random.normal(kx1, (8, IN_FEATURES), jnp.float32)
    out1 = jax.block_until_ready(fnn_forward(x1, kparams))
    ref1 = fnn_reference(x1, params)
    assert out1.shape == (8, NUM_OUTPUTS), out1.shape
    # bf16 MXU operands -> loosened tolerance vs the f32 reference.
    assert jnp.allclose(out1, ref1, atol=5e-2, rtol=5e-2), "mismatch vs reference (batch=8)"

    # Small test 2: non-divisible batch exercises padding + multi-step grid.
    x2 = jax.random.normal(kx2, (37, IN_FEATURES), jnp.float32)
    out2 = jax.block_until_ready(fnn_forward(x2, kparams, tile_b=16))
    ref2 = fnn_reference(x2, params)
    assert out2.shape == (37, NUM_OUTPUTS), out2.shape
    assert jnp.allclose(out2, ref2, atol=5e-2, rtol=5e-2), "mismatch vs reference (batch=37)"

    print("KERNEL_OK")
</pallas_src>

<mosaic_0001>
module attributes {stable_mosaic.version = 11 : i64} {
  func.func @fnn_kernel(%arg0: i32, %arg1: memref<8x6xf32, #tpu.memory_space<vmem>>, %arg2: memref<6x128xbf16, #tpu.memory_space<vmem>>, %arg3: memref<1x128xf32, #tpu.memory_space<vmem>>, %arg4: memref<128x128xbf16, #tpu.memory_space<vmem>>, %arg5: memref<1x128xf32, #tpu.memory_space<vmem>>, %arg6: memref<128x128xbf16, #tpu.memory_space<vmem>>, %arg7: memref<1x128xf32, #tpu.memory_space<vmem>>, %arg8: memref<128x128xbf16, #tpu.memory_space<vmem>>, %arg9: memref<1x128xf32, #tpu.memory_space<vmem>>, %arg10: memref<8x128xf32, #tpu.memory_space<vmem>>) attributes {dimension_semantics = [#tpu.dimension_semantics<parallel>], iteration_bounds = array<i64: 1>, scalar_prefetch = 0 : i64, scratch_operands = 0 : i64, tpu.core_type = #tpu.core_type<tc>, window_params = [{transform_indices = @transform_0, window_bounds = array<i64: 8, 6>}, {pipeline_mode = #tpu.pipeline_mode<synchronous>, transform_indices = @transform_1, window_bounds = array<i64: 6, 128>}, {pipeline_mode = #tpu.pipeline_mode<synchronous>, transform_indices = @transform_2, window_bounds = array<i64: 1, 128>}, {pipeline_mode = #tpu.pipeline_mode<synchronous>, transform_indices = @transform_3, window_bounds = array<i64: 128, 128>}, {pipeline_mode = #tpu.pipeline_mode<synchronous>, transform_indices = @transform_4, window_bounds = array<i64: 1, 128>}, {pipeline_mode = #tpu.pipeline_mode<synchronous>, transform_indices = @transform_5, window_bounds = array<i64: 128, 128>}, {pipeline_mode = #tpu.pipeline_mode<synchronous>, transform_indices = @transform_6, window_bounds = array<i64: 1, 128>}, {pipeline_mode = #tpu.pipeline_mode<synchronous>, transform_indices = @transform_7, window_bounds = array<i64: 128, 128>}, {pipeline_mode = #tpu.pipeline_mode<synchronous>, transform_indices = @transform_8, window_bounds = array<i64: 1, 128>}, {transform_indices = @transform_9, window_bounds = array<i64: 8, 128>}]} {
    %c0 = arith.constant 0 : index
    %c0_0 = arith.constant 0 : index
    %0 = vector.load %arg1[%c0, %c0_0] : memref<8x6xf32, #tpu.memory_space<vmem>>, vector<8x6xf32>
    %1 = arith.truncf %0 : vector<8x6xf32> to vector<8x6xbf16>
    %c0_1 = arith.constant 0 : index
    %c0_2 = arith.constant 0 : index
    %2 = vector.load %arg2[%c0_1, %c0_2] : memref<6x128xbf16, #tpu.memory_space<vmem>>, vector<6x128xbf16>
    %cst = arith.constant dense<0.000000e+00> : vector<8x128xf32>
    %3 = tpu.matmul %1, %2, %cst {dimension_numbers = #tpu.dot_dimension_numbers<[1], [0], [0], [1], [0, 0, 1, 1], [], []>} : vector<8x6xbf16>, vector<6x128xbf16>, vector<8x128xf32> -> vector<8x128xf32>
    %c0_3 = arith.constant 0 : index
    %c0_4 = arith.constant 0 : index
    %4 = vector.load %arg3[%c0_3, %c0_4] : memref<1x128xf32, #tpu.memory_space<vmem>>, vector<1x128xf32>
    %5 = vector.broadcast %4 : vector<1x128xf32> to vector<8x128xf32>
    %6 = arith.addf %3, %5 : vector<8x128xf32>
    %cst_5 = arith.constant 0.000000e+00 : f32
    %7 = vector.broadcast %cst_5 : f32 to vector<8x128xf32>
    %8 = arith.maximumf %6, %7 : vector<8x128xf32>
    %9 = arith.truncf %8 : vector<8x128xf32> to vector<8x128xbf16>
    %c0_6 = arith.constant 0 : index
    %c0_7 = arith.constant 0 : index
    %10 = vector.load %arg4[%c0_6, %c0_7] : memref<128x128xbf16, #tpu.memory_space<vmem>>, vector<128x128xbf16>
    %cst_8 = arith.constant dense<0.000000e+00> : vector<8x128xf32>
    %11 = tpu.matmul %9, %10, %cst_8 {dimension_numbers = #tpu.dot_dimension_numbers<[1], [0], [0], [1], [0, 0, 1, 1], [], []>} : vector<8x128xbf16>, vector<128x128xbf16>, vector<8x128xf32> -> vector<8x128xf32>
    %c0_9 = arith.constant 0 : index
    %c0_10 = arith.constant 0 : index
    %12 = vector.load %arg5[%c0_9, %c0_10] : memref<1x128xf32, #tpu.memory_space<vmem>>, vector<1x128xf32>
    %13 = vector.broadcast %12 : vector<1x128xf32> to vector<8x128xf32>
    %14 = arith.addf %11, %13 : vector<8x128xf32>
    %cst_11 = arith.constant 0.000000e+00 : f32
    %15 = vector.broadcast %cst_11 : f32 to vector<8x128xf32>
    %16 = arith.maximumf %14, %15 : vector<8x128xf32>
    %17 = arith.truncf %16 : vector<8x128xf32> to vector<8x128xbf16>
    %c0_12 = arith.constant 0 : index
    %c0_13 = arith.constant 0 : index
    %18 = vector.load %arg6[%c0_12, %c0_13] : memref<128x128xbf16, #tpu.memory_space<vmem>>, vector<128x128xbf16>
    %cst_14 = arith.constant dense<0.000000e+00> : vector<8x128xf32>
    %19 = tpu.matmul %17, %18, %cst_14 {dimension_numbers = #tpu.dot_dimension_numbers<[1], [0], [0], [1], [0, 0, 1, 1], [], []>} : vector<8x128xbf16>, vector<128x128xbf16>, vector<8x128xf32> -> vector<8x128xf32>
    %c0_15 = arith.constant 0 : index
    %c0_16 = arith.constant 0 : index
    %20 = vector.load %arg7[%c0_15, %c0_16] : memref<1x128xf32, #tpu.memory_space<vmem>>, vector<1x128xf32>
    %21 = vector.broadcast %20 : vector<1x128xf32> to vector<8x128xf32>
    %22 = arith.addf %19, %21 : vector<8x128xf32>
    %cst_17 = arith.constant 0.000000e+00 : f32
    %23 = vector.broadcast %cst_17 : f32 to vector<8x128xf32>
    %24 = arith.maximumf %22, %23 : vector<8x128xf32>
    %25 = arith.truncf %24 : vector<8x128xf32> to vector<8x128xbf16>
    %c0_18 = arith.constant 0 : index
    %c0_19 = arith.constant 0 : index
    %26 = vector.load %arg8[%c0_18, %c0_19] : memref<128x128xbf16, #tpu.memory_space<vmem>>, vector<128x128xbf16>
    %cst_20 = arith.constant dense<0.000000e+00> : vector<8x128xf32>
    %27 = tpu.matmul %25, %26, %cst_20 {dimension_numbers = #tpu.dot_dimension_numbers<[1], [0], [0], [1], [0, 0, 1, 1], [], []>} : vector<8x128xbf16>, vector<128x128xbf16>, vector<8x128xf32> -> vector<8x128xf32>
    %c0_21 = arith.constant 0 : index
    %c0_22 = arith.constant 0 : index
    %28 = vector.load %arg9[%c0_21, %c0_22] : memref<1x128xf32, #tpu.memory_space<vmem>>, vector<1x128xf32>
    %29 = vector.broadcast %28 : vector<1x128xf32> to vector<8x128xf32>
    %30 = arith.addf %27, %29 : vector<8x128xf32>
    %c0_23 = arith.constant 0 : index
    %c0_24 = arith.constant 0 : index
    %31 = vector.load %arg10[%c0_23, %c0_24] : memref<8x128xf32, #tpu.memory_space<vmem>>, vector<8x128xf32>
    tpu.vector_store %arg10[%c0_23, %c0_24], %30 {strides = array<i32>} : memref<8x128xf32, #tpu.memory_space<vmem>>, vector<8x128xf32>,
    return
  }
  func.func @transform_0(%arg0: i32) -> (i32, i32) {
    %c0_i32 = arith.constant 0 : i32
    %c0_i32_0 = arith.constant 0 : i32
    return %arg0, %c0_i32 : i32, i32
  }
  func.func @transform_1(%arg0: i32) -> (i32, i32) {
    %c0_i32 = arith.constant 0 : i32
    %c0_i32_0 = arith.constant 0 : i32
    %c0_i32_1 = arith.constant 0 : i32
    return %c0_i32, %c0_i32_0 : i32, i32
  }
  func.func @transform_2(%arg0: i32) -> (i32, i32) {
    %c0_i32 = arith.constant 0 : i32
    %c0_i32_0 = arith.constant 0 : i32
    %c0_i32_1 = arith.constant 0 : i32
    return %c0_i32, %c0_i32_0 : i32, i32
  }
  func.func @transform_3(%arg0: i32) -> (i32, i32) {
    %c0_i32 = arith.constant 0 : i32
    %c0_i32_0 = arith.constant 0 : i32
    %c0_i32_1 = arith.constant 0 : i32
    return %c0_i32, %c0_i32_0 : i32, i32
  }
  func.func @transform_4(%arg0: i32) -> (i32, i32) {
    %c0_i32 = arith.constant 0 : i32
    %c0_i32_0 = arith.constant 0 : i32
    %c0_i32_1 = arith.constant 0 : i32
    return %c0_i32, %c0_i32_0 : i32, i32
  }
  func.func @transform_5(%arg0: i32) -> (i32, i32) {
    %c0_i32 = arith.constant 0 : i32
    %c0_i32_0 = arith.constant 0 : i32
    %c0_i32_1 = arith.constant 0 : i32
    return %c0_i32, %c0_i32_0 : i32, i32
  }
  func.func @transform_6(%arg0: i32) -> (i32, i32) {
    %c0_i32 = arith.constant 0 : i32
    %c0_i32_0 = arith.constant 0 : i32
    %c0_i32_1 = arith.constant 0 : i32
    return %c0_i32, %c0_i32_0 : i32, i32
  }
  func.func @transform_7(%arg0: i32) -> (i32, i32) {
    %c0_i32 = arith.constant 0 : i32
    %c0_i32_0 = arith.constant 0 : i32
    %c0_i32_1 = arith.constant 0 : i32
    return %c0_i32, %c0_i32_0 : i32, i32
  }
  func.func @transform_8(%arg0: i32) -> (i32, i32) {
    %c0_i32 = arith.constant 0 : i32
    %c0_i32_0 = arith.constant 0 : i32
    %c0_i32_1 = arith.constant 0 : i32
    return %c0_i32, %c0_i32_0 : i32, i32
  }
  func.func @transform_9(%arg0: i32) -> (i32, i32) {
    %c0_i32 = arith.constant 0 : i32
    %c0_i32_0 = arith.constant 0 : i32
    return %arg0, %c0_i32 : i32, i32
  }
}

</mosaic_0001>

<llo_original>
// kernel: tpu_custom_call.1
$region0: #{tpu_custom_call.1}
  #allocation0 [shape = 'u32[]', space=smem, size = 0x4, offset = 0x4, fixed_abs, tag = 'smem constant byte address 0x4 - core index']
  #allocation1 [shape = 'u32[72,128]{1,0:T(1,128)}', space=vmem, size = 0x9000, scoped, tag = 'internal scratch']
  %s0 = inlined_call_operand.hbm [shape: f32[8,6], index: 0, kind: input, shape index: {}]
  %s1 = inlined_call_operand.hbm [shape: bf16[6,128], index: 1, kind: input, shape index: {}]
  %s2 = inlined_call_operand.vmem [shape: f32[1,128], index: 2, kind: input, shape index: {}]
  %s3 = inlined_call_operand.hbm [shape: bf16[128,128], index: 3, kind: input, shape index: {}]
  %s4 = inlined_call_operand.vmem [shape: f32[1,128], index: 4, kind: input, shape index: {}]
  %s5 = inlined_call_operand.hbm [shape: bf16[128,128], index: 5, kind: input, shape index: {}]
  %s6 = inlined_call_operand.vmem [shape: f32[1,128], index: 6, kind: input, shape index: {}]
  %s7 = inlined_call_operand.hbm [shape: bf16[128,128], index: 7, kind: input, shape index: {}]
  %s8 = inlined_call_operand.vmem [shape: f32[1,128], index: 8, kind: input, shape index: {}]
  %s9 = inlined_call_operand.hbm [shape: f32[8,128], index: 9, kind: output, shape index: {}]
  %s10 = sld [smem:[#allocation0]]
  $region66: #{tpu_custom_call.1} parent=0
    _
  %s12 = ssub.s32 1, %s10
  %s13 = scalar_select 0, %s12, %s10
  $region1: #{tpu_custom_call.1} parent=0
    #allocation2 [shape = 'u8[4096]{0}', space=vmem, size = 0x1000, scoped, tag = 'input window, operand 0, single buffered']
    #allocation3 [shape = 's32[1]{0}', space=sflag, size = 0x4, scoped, tag = 'scoped memory for tpu_custom_call.1']
    #allocation4 [shape = 's32[1]{0}', space=sflag, size = 0x4, scoped, tag = 'scoped memory for tpu_custom_call.1']
    #allocation5 [shape = 'u8[2048]{0}', space=vmem, size = 0x800, scoped, tag = 'input window, operand 1, single buffered']
    #allocation6 [shape = 's32[1]{0}', space=sflag, size = 0x4, scoped, tag = 'scoped memory for tpu_custom_call.1']
    #allocation7 [shape = 'u8[32768]{0}', space=vmem, size = 0x8000, scoped, tag = 'input window, operand 3, single buffered']
    #allocation8 [shape = 'u8[32768]{0}', space=vmem, size = 0x8000, scoped, tag = 'input window, operand 5, single buffered']
    #allocation9 [shape = 's32[1]{0}', space=sflag, size = 0x4, scoped, tag = 'scoped memory for tpu_custom_call.1']
    #allocation10 [shape = 'u8[32768]{0}', space=vmem, size = 0x8000, scoped, tag = 'input window, operand 7, single buffered']
    #allocation11 [shape = 'u8[4096]{0}', space=vmem, size = 0x1000, scoped, tag = 'output window, operand 0, single buffered']
    %14 = vsyncpa [#allocation3], 0
    %15 = vsyncpa [#allocation6], 0
    %16 = vsyncpa [#allocation9], 0
    %17 = vsyncpa [#allocation4], 0
    // Predicated region
    $region2: #{tpu_custom_call.1} parent=1 // pred_check
      _
    $region3: #{tpu_custom_call.1} parent=1 // pred_check_branch
      %19 = sbr.rel (0) target = $region5
    $region4: #{tpu_custom_call.1} parent=1 // pred_region
      %21 = vsyncadd [#allocation3], 0
      %s23 = sshll.u32 %s0, 4
      %s24 = int_to_ptr.hbm [resolvable:$true] %s23
      %s25 = sshll.u32 [#allocation2], 4
      %s26 = int_to_ptr.vmem [resolvable:$true] %s25
      %28 = dma.hbm_to_vmem [thread:$0]  %s24, 128, %s26, [#allocation3]
    $region5: #{tpu_custom_call.1} parent=1 // pred_fallthru
      _
    // Predicated region
    $region6: #{tpu_custom_call.1} parent=1 // pred_check
      _
    $region7: #{tpu_custom_call.1} parent=1 // pred_check_branch
      %30 = sbr.rel (0) target = $region9
    $region8: #{tpu_custom_call.1} parent=1 // pred_region
      %32 = vsyncadd [#allocation6], 0
      %s34 = sshll.u32 %s1, 4
      %s35 = int_to_ptr.hbm [resolvable:$true] %s34
      %s36 = sshll.u32 [#allocation5], 4
      %s37 = int_to_ptr.vmem [resolvable:$true] %s36
      %39 = dma.hbm_to_vmem [thread:$0]  %s35, 64, %s37, [#allocation6]
    $region9: #{tpu_custom_call.1} parent=1 // pred_fallthru
      _
    // Predicated region
    $region10: #{tpu_custom_call.1} parent=1 // pred_check
      _
    $region11: #{tpu_custom_call.1} parent=1 // pred_check_branch
      %41 = sbr.rel (0) target = $region13
    $region12: #{tpu_custom_call.1} parent=1 // pred_region
      _
    $region13: #{tpu_custom_call.1} parent=1 // pred_fallthru
      _
    // Predicated region
    $region14: #{tpu_custom_call.1} parent=1 // pred_check
      _
    $region15: #{tpu_custom_call.1} parent=1 // pred_check_branch
      %43 = sbr.rel (0) target = $region17
    $region16: #{tpu_custom_call.1} parent=1 // pred_region
      %45 = vsyncadd [#allocation6], 0
      %s46 = sshll.u32 %s3, 4
      %s47 = int_to_ptr.hbm [resolvable:$true] %s46
      %s48 = sshll.u32 [#allocation7], 4
      %s49 = int_to_ptr.vmem [resolvable:$true] %s48
      %54 = dma.hbm_to_vmem [thread:$0]  %s47, 1024, %s49, [#allocation6], 64, 64, 4
    $region17: #{tpu_custom_call.1} parent=1 // pred_fallthru
      _
    // Predicated region
    $region18: #{tpu_custom_call.1} parent=1 // pred_check
      _
    $region19: #{tpu_custom_call.1} parent=1 // pred_check_branch
      %56 = sbr.rel (0) target = $region21
    $region20: #{tpu_custom_call.1} parent=1 // pred_region
      _
    $region21: #{tpu_custom_call.1} parent=1 // pred_fallthru
      _
    // Predicated region
    $region22: #{tpu_custom_call.1} parent=1 // pred_check
      _
    $region23: #{tpu_custom_call.1} parent=1 // pred_check_branch
      %58 = sbr.rel (0) target = $region25
    $region24: #{tpu_custom_call.1} parent=1 // pred_region
      %60 = vsyncadd [#allocation9], 0
      %s61 = sshll.u32 %s5, 4
      %s62 = int_to_ptr.hbm [resolvable:$true] %s61
      %s63 = sshll.u32 [#allocation8], 4
      %s64 = int_to_ptr.vmem [resolvable:$true] %s63
      %69 = dma.hbm_to_vmem [thread:$0]  %s62, 1024, %s64, [#allocation9], 64, 64, 4
    $region25: #{tpu_custom_call.1} parent=1 // pred_fallthru
      _
    // Predicated region
    $region26: #{tpu_custom_call.1} parent=1 // pred_check
      _
    $region27: #{tpu_custom_call.1} parent=1 // pred_check_branch
      %71 = sbr.rel (0) target = $region29
    $region28: #{tpu_custom_call.1} parent=1 // pred_region
      _
    $region29: #{tpu_custom_call.1} parent=1 // pred_fallthru
      _
    // Predicated region
    $region30: #{tpu_custom_call.1} parent=1 // pred_check
      _
    $region31: #{tpu_custom_call.1} parent=1 // pred_check_branch
      %73 = sbr.rel (0) target = $region33
    $region32: #{tpu_custom_call.1} parent=1 // pred_region
      %75 = vsyncadd [#allocation9], 0
      %s76 = sshll.u32 %s7, 4
      %s77 = int_to_ptr.hbm [resolvable:$true] %s76
      %s78 = sshll.u32 [#allocation10], 4
      %s79 = int_to_ptr.vmem [resolvable:$true] %s78
      %84 = dma.hbm_to_vmem [thread:$0]  %s77, 1024, %s79, [#allocation9], 64, 64, 4
    $region33: #{tpu_custom_call.1} parent=1 // pred_fallthru
      _
    // Predicated region
    $region34: #{tpu_custom_call.1} parent=1 // pred_check
      _
    $region35: #{tpu_custom_call.1} parent=1 // pred_check_branch
      %86 = sbr.rel (0) target = $region37
    $region36: #{tpu_custom_call.1} parent=1 // pred_region
      _
    $region37: #{tpu_custom_call.1} parent=1 // pred_fallthru
      _
    // Predicated region
    $region38: #{tpu_custom_call.1} parent=1 // pred_check
      _
    $region39: #{tpu_custom_call.1} parent=1 // pred_check_branch
      %88 = sbr.rel (0) target = $region41
    $region40: #{tpu_custom_call.1} parent=1 // pred_region
      %90 = dma.done [#allocation3], 128
    $region41: #{tpu_custom_call.1} parent=1 // pred_fallthru
      _
    // Predicated region
    $region42: #{tpu_custom_call.1} parent=1 // pred_check
      _
    $region43: #{tpu_custom_call.1} parent=1 // pred_check_branch
      %92 = sbr.rel (0) target = $region45
    $region44: #{tpu_custom_call.1} parent=1 // pred_region
      %94 = dma.done [#allocation6], 64
    $region45: #{tpu_custom_call.1} parent=1 // pred_fallthru
      _
    // Predicated region
    $region46: #{tpu_custom_call.1} parent=1 // pred_check
      _
    $region47: #{tpu_custom_call.1} parent=1 // pred_check_branch
      %96 = sbr.rel (0) target = $region49
    $region48: #{tpu_custom_call.1} parent=1 // pred_region
      %98 = dma.done [#allocation6], 1024
    $region49: #{tpu_custom_call.1} parent=1 // pred_fallthru
      _
    // Predicated region
    $region50: #{tpu_custom_call.1} parent=1 // pred_check
      _
    $region51: #{tpu_custom_call.1} parent=1 // pred_check_branch
      %100 = sbr.rel (0) target = $region53
    $region52: #{tpu_custom_call.1} parent=1 // pred_region
      %102 = dma.done [#allocation9], 1024
    $region53: #{tpu_custom_call.1} parent=1 // pred_fallthru
      _
    // Predicated region
    $region54: #{tpu_custom_call.1} parent=1 // pred_check
      _
    $region55: #{tpu_custom_call.1} parent=1 // pred_check_branch
      %104 = sbr.rel (0) target = $region57
    $region56: #{tpu_custom_call.1} parent=1 // pred_region
      %106 = dma.done [#allocation9], 1024
    $region57: #{tpu_custom_call.1} parent=1 // pred_fallthru
      _
    %v108 = vld [vmem:[#allocation2] sm:$0xff]
    %v109 = vpack.c.bf16 %v108, %v108
    %v110 = vld [vmem:[#allocation5] sm:$0x7]
    %v111 = vld [vmem:[%s2] sm:$0x1]
    %v113 = vperm.slane %v111, 0
    %vm115 = vcmask 48128
    %v117 = vsel %vm115, %v109, 0
    %vm119 = vcmask 1042432
    %v121 = vsel %vm119, %v110, 0
    %123 = vmatpush.bf16.msra.mxu0 0
    %124 = vmatpush.bf16.msra.mxu0 0
    %125 = vmatpush.bf16.msra.mxu0 0
    %126 = vmatpush.bf16.msra.mxu0 0
    %127 = vmatpush.bf16.msra.mxu0 0
    %128 = vmatpush.bf16.msra.mxu0 0
    %129 = vmatpush.bf16.msra.mxu0 0
    %130 = vmatpush.bf16.msra.mxu0 %v121
    %131 = vmatmul.bf16.gmra.mxu0 %v117
    %v132 = vpop.f32.mrf.mxu0
    %v133 = vadd.f32 %v113, %v132
    %v134 = vpop.f32.mrf.mxu0
    %135 = vdwg.mxu0
    %v136 = vmax.f32 %v133, 0.0
    %v137 = vpack.c.bf16 %v136, %v136
    %v138 = vld [vmem:[#allocation7] sm:$0xf]
    %v139 = vld [vmem:[#allocation7 + $0x4] sm:$0xf]
    %v140 = vld [vmem:[#allocation7 + $0x8] sm:$0xf]
    %v141 = vld [vmem:[#allocation7 + $0xc] sm:$0xf]
    %v142 = vld [vmem:[#allocation7 + $0x10] sm:$0xf]
    %v143 = vld [vmem:[#allocation7 + $0x14] sm:$0xf]
    %v144 = vld [vmem:[#allocation7 + $0x18] sm:$0xf]
    %v145 = vld [vmem:[#allocation7 + $0x1c] sm:$0xf]
    %v146 = vld [vmem:[#allocation7 + $0x20] sm:$0xf]
    %v147 = vld [vmem:[#allocation7 + $0x24] sm:$0xf]
    %v148 = vld [vmem:[#allocation7 + $0x28] sm:$0xf]
    %v149 = vld [vmem:[#allocation7 + $0x2c] sm:$0xf]
    %v150 = vld [vmem:[#allocation7 + $0x30] sm:$0xf]
    %v151 = vld [vmem:[#allocation7 + $0x34] sm:$0xf]
    %v152 = vld [vmem:[#allocation7 + $0x38] sm:$0xf]
    %v153 = vld [vmem:[#allocation7 + $0x3c] sm:$0xf]
    %v154 = vld [vmem:[%s4] sm:$0x1]
    %v156 = vperm.slane %v154, 0
    %v174 = vunpack.c.l.b16 %v138
    %v175 = vunpack.c.l.b16 %v139
    %v176 = vunpack.c.l.b16 %v140
    %v177 = vunpack.c.l.b16 %v141
    %v178 = vunpack.c.l.b16 %v142
    %v179 = vunpack.c.l.b16 %v143
    %v180 = vunpack.c.l.b16 %v144
    %v181 = vunpack.c.l.b16 %v145
    %v182 = vunpack.c.l.b16 %v146
    %v183 = vunpack.c.l.b16 %v147
    %v184 = vunpack.c.l.b16 %v148
    %v185 = vunpack.c.l.b16 %v149
    %v186 = vunpack.c.l.b16 %v150
    %v187 = vunpack.c.l.b16 %v151
    %v188 = vunpack.c.l.b16 %v152
    %v189 = vunpack.c.l.b16 %v153
    %v190 = vpack.c.b16 %v175, %v174
    %v191 = vpack.c.b16 %v177, %v176
    %v192 = vpack.c.b16 %v179, %v178
    %v193 = vpack.c.b16 %v181, %v180
    %v194 = vpack.c.b16 %v183, %v182
    %v195 = vpack.c.b16 %v185, %v184
    %v196 = vpack.c.b16 %v187, %v186
    %v197 = vpack.c.b16 %v189, %v188
    %206 = vmatpush.bf16.msra.mxu0 %v197
    %207 = vmatpush.bf16.msra.mxu0 %v196
    %208 = vmatpush.bf16.msra.mxu0 %v195
    %209 = vmatpush.bf16.msra.mxu0 %v194
    %210 = vmatpush.bf16.msra.mxu0 %v193
    %211 = vmatpush.bf16.msra.mxu0 %v192
    %212 = vmatpush.bf16.msra.mxu0 %v191
    %213 = vmatpush.bf16.msra.mxu0 %v190
    %214 = vmatmul.bf16.gmra.mxu0 %v137
    %v215 = vpop.f32.mrf.mxu0
    %v216 = vadd.f32 %v156, %v215
    %v217 = vpop.f32.mrf.mxu0
    %218 = vdwg.mxu0
    %v219 = vmax.f32 %v216, 0.0
    %v220 = vpack.c.bf16 %v219, %v219
    %v221 = vld [vmem:[#allocation8] sm:$0xf]
    %v222 = vld [vmem:[#allocation8 + $0x4] sm:$0xf]
    %v223 = vld [vmem:[#allocation8 + $0x8] sm:$0xf]
    %v224 = vld [vmem:[#allocation8 + $0xc] sm:$0xf]
    %v225 = vld [vmem:[#allocation8 + $0x10] sm:$0xf]
    %v226 = vld [vmem:[#allocation8 + $0x14] sm:$0xf]
    %v227 = vld [vmem:[#allocation8 + $0x18] sm:$0xf]
    %v228 = vld [vmem:[#allocation8 + $0x1c] sm:$0xf]
    %v229 = vld [vmem:[#allocation8 + $0x20] sm:$0xf]
    %v230 = vld [vmem:[#allocation8 + $0x24] sm:$0xf]
    %v231 = vld [vmem:[#allocation8 + $0x28] sm:$0xf]
    %v232 = vld [vmem:[#allocation8 + $0x2c] sm:$0xf]
    %v233 = vld [vmem:[#allocation8 + $0x30] sm:$0xf]
    %v234 = vld [vmem:[#allocation8 + $0x34] sm:$0xf]
    %v235 = vld [vmem:[#allocation8 + $0x38] sm:$0xf]
    %v236 = vld [vmem:[#allocation8 + $0x3c] sm:$0xf]
    %v237 = vld [vmem:[%s6] sm:$0x1]
    %v239 = vperm.slane %v237, 0
    %v257 = vunpack.c.l.b16 %v221
    %v258 = vunpack.c.l.b16 %v222
    %v259 = vunpack.c.l.b16 %v223
    %v260 = vunpack.c.l.b16 %v224
    %v261 = vunpack.c.l.b16 %v225
    %v262 = vunpack.c.l.b16 %v226
    %v263 = vunpack.c.l.b16 %v227
    %v264 = vunpack.c.l.b16 %v228
    %v265 = vunpack.c.l.b16 %v229
    %v266 = vunpack.c.l.b16 %v230
    %v267 = vunpack.c.l.b16 %v231
    %v268 = vunpack.c.l.b16 %v232
    %v269 = vunpack.c.l.b16 %v233
    %v270 = vunpack.c.l.b16 %v234
    %v271 = vunpack.c.l.b16 %v235
    %v272 = vunpack.c.l.b16 %v236
    %v273 = vpack.c.b16 %v258, %v257
    %v274 = vpack.c.b16 %v260, %v259
    %v275 = vpack.c.b16 %v262, %v261
    %v276 = vpack.c.b16 %v264, %v263
    %v277 = vpack.c.b16 %v266, %v265
    %v278 = vpack.c.b16 %v268, %v267
    %v279 = vpack.c.b16 %v270, %v269
    %v280 = vpack.c.b16 %v272, %v271
    %289 = vmatpush.bf16.msra.mxu0 %v280
    %290 = vmatpush.bf16.msra.mxu0 %v279
    %291 = vmatpush.bf16.msra.mxu0 %v278
    %292 = vmatpush.bf16.msra.mxu0 %v277
    %293 = vmatpush.bf16.msra.mxu0 %v276
    %294 = vmatpush.bf16.msra.mxu0 %v275
    %295 = vmatpush.bf16.msra.mxu0 %v274
    %296 = vmatpush.bf16.msra.mxu0 %v273
    %297 = vmatmul.bf16.gmra.mxu0 %v220
    %v298 = vpop.f32.mrf.mxu0
    %v299 = vadd.f32 %v239, %v298
    %v300 = vpop.f32.mrf.mxu0
    %301 = vdwg.mxu0
    %v302 = vmax.f32 %v299, 0.0
    %v303 = vpack.c.bf16 %v302, %v302
    %v304 = vld [vmem:[#allocation10] sm:$0xf]
    %v305 = vld [vmem:[#allocation10 + $0x4] sm:$0xf]
    %v306 = vld [vmem:[#allocation10 + $0x8] sm:$0xf]
    %v307 = vld [vmem:[#allocation10 + $0xc] sm:$0xf]
    %v308 = vld [vmem:[#allocation10 + $0x10] sm:$0xf]
    %v309 = vld [vmem:[#allocation10 + $0x14] sm:$0xf]
    %v310 = vld [vmem:[#allocation10 + $0x18] sm:$0xf]
    %v311 = vld [vmem:[#allocation10 + $0x1c] sm:$0xf]
    %v312 = vld [vmem:[#allocation10 + $0x20] sm:$0xf]
    %v313 = vld [vmem:[#allocation10 + $0x24] sm:$0xf]
    %v314 = vld [vmem:[#allocation10 + $0x28] sm:$0xf]
    %v315 = vld [vmem:[#allocation10 + $0x2c] sm:$0xf]
    %v316 = vld [vmem:[#allocation10 + $0x30] sm:$0xf]
    %v317 = vld [vmem:[#allocation10 + $0x34] sm:$0xf]
    %v318 = vld [vmem:[#allocation10 + $0x38] sm:$0xf]
    %v319 = vld [vmem:[#allocation10 + $0x3c] sm:$0xf]
    %v320 = vld [vmem:[%s8] sm:$0x1]
    %v322 = vperm.slane %v320, 0
    %v340 = vunpack.c.l.b16 %v304
    %v341 = vunpack.c.l.b16 %v305
    %v342 = vunpack.c.l.b16 %v306
    %v343 = vunpack.c.l.b16 %v307
    %v344 = vunpack.c.l.b16 %v308
    %v345 = vunpack.c.l.b16 %v309
    %v346 = vunpack.c.l.b16 %v310
    %v347 = vunpack.c.l.b16 %v311
    %v348 = vunpack.c.l.b16 %v312
    %v349 = vunpack.c.l.b16 %v313
    %v350 = vunpack.c.l.b16 %v314
    %v351 = vunpack.c.l.b16 %v315
    %v352 = vunpack.c.l.b16 %v316
    %v353 = vunpack.c.l.b16 %v317
    %v354 = vunpack.c.l.b16 %v318
    %v355 = vunpack.c.l.b16 %v319
    %v356 = vpack.c.b16 %v341, %v340
    %v357 = vpack.c.b16 %v343, %v342
    %v358 = vpack.c.b16 %v345, %v344
    %v359 = vpack.c.b16 %v347, %v346
    %v360 = vpack.c.b16 %v349, %v348
    %v361 = vpack.c.b16 %v351, %v350
    %v362 = vpack.c.b16 %v353, %v352
    %v363 = vpack.c.b16 %v355, %v354
    %372 = vmatpush.bf16.msra.mxu0 %v363
    %373 = vmatpush.bf16.msra.mxu0 %v362
    %374 = vmatpush.bf16.msra.mxu0 %v361
    %375 = vmatpush.bf16.msra.mxu0 %v360
    %376 = vmatpush.bf16.msra.mxu0 %v359
    %377 = vmatpush.bf16.msra.mxu0 %v358
    %378 = vmatpush.bf16.msra.mxu0 %v357
    %379 = vmatpush.bf16.msra.mxu0 %v356
    %380 = vmatmul.bf16.gmra.mxu0 %v303
    %v381 = vpop.f32.mrf.mxu0
    %v382 = vadd.f32 %v322, %v381
    %v383 = vpop.f32.mrf.mxu0
    %384 = vdwg.mxu0
    %385 = vst [vmem:[#allocation11] sm:$0xff] %v382
    // Predicated region
    $region58: #{tpu_custom_call.1} parent=1 // pred_check
      _
    $region59: #{tpu_custom_call.1} parent=1 // pred_check_branch
      %387 = sbr.rel (0) target = $region61
    $region60: #{tpu_custom_call.1} parent=1 // pred_region
      %389 = vsyncadd [#allocation4], 0
      %s391 = sshll.u32 [#allocation11], 4
      %s392 = int_to_ptr.vmem [resolvable:$true] %s391
      %s393 = sshll.u32 %s9, 4
      %s394 = int_to_ptr.hbm [resolvable:$true] %s393
      %396 = dma.vmem_to_hbm [thread:$0]  %s392, 128, %s394, [#allocation4]
    $region61: #{tpu_custom_call.1} parent=1 // pred_fallthru
      _
    // Predicated region
    $region62: #{tpu_custom_call.1} parent=1 // pred_check
      _
    $region63: #{tpu_custom_call.1} parent=1 // pred_check_branch
      %398 = sbr.rel (0) target = $region65
    $region64: #{tpu_custom_call.1} parent=1 // pred_region
      %400 = dma.done [#allocation4], 128
    $region65: #{tpu_custom_call.1} parent=1 // pred_fallthru
      _
    %401 = vsyncpa [#allocation3], 1
    %402 = vsyncpa [#allocation6], 1
    %403 = vsyncpa [#allocation9], 1
    %404 = vsyncpa [#allocation4], 1

</llo_original>
